<compile_context>
chip_gen: v5e
topology: v5e:2x2
jax: 0.10.0
libtpu: 0.0.40
codegen_flags: <defaults>
</compile_context>

<pallas_src>
import functools

import jax
import jax.numpy as jnp
from jax import lax
from jax.experimental import pallas as pl
from jax.experimental.pallas import tpu as pltpu

_LANE = 128


def _dice_sums_kernel(score_ref, labels_ref, out_ref, *, apply_softmax,
                      num_classes, labels_are_float, nt, nt_per_part,
                      acc_lanes, num_chunks, full_tail_chunks, tail_rem,
                      needs_mask, needs_guard):
    """Accumulate lane-wide per-class partial sums into the output block.

    score_ref : (C, tile_n)  native dtype   one tile of flattened pixels (one batch row)
    labels_ref: (1, tile_n)  native dtype   class-id labels for the same pixels
    out_ref   : (3, C, acc_lanes) f32       [intersect, z_sum, y_sum] lane partials,
                                            VMEM-resident across the (b, j) axes.
    """
    p = pl.program_id(0)   # megacore part (only >1 on 2-TC chips)
    b = pl.program_id(1)   # batch row
    j = pl.program_id(2)   # tile index within this part

    @pl.when((b == 0) & (j == 0))
    def _init():
        out_ref[...] = jnp.zeros_like(out_ref)

    tile = p * nt_per_part + j          # logical tile index along H*W

    cmp_dtype = jnp.float32 if labels_are_float else jnp.int32
    class_ids = lax.broadcasted_iota(
        jnp.int32, (num_classes, acc_lanes), 0).astype(cmp_dtype)

    def _chunk(start, valid, acc):
        acc_i, acc_z, acc_y = acc
        sl = pl.ds(start, acc_lanes)
        s = score_ref[:, sl].astype(jnp.float32)     # per-chunk upcast (bf16 ok)
        lbl = labels_ref[:, sl].astype(cmp_dtype)    # per-chunk upcast (int8 ok)
        if apply_softmax:
            # softmax over the class (sublane) axis == torch.softmax(dim=1)
            m = jnp.max(s, axis=0, keepdims=True)
            e = jnp.exp(s - m)
            inv = pl.reciprocal(jnp.sum(e, axis=0, keepdims=True), approx=False)
            s = e * inv
        onehot = lbl == class_ids                    # (C, acc_lanes) bool
        if valid is not None:
            s = jnp.where(valid, s, 0.0)             # mask AFTER softmax
            onehot = jnp.logical_and(onehot, valid)
        t = onehot.astype(jnp.float32)
        return (acc_i + s * t, acc_z + s * s, acc_y + t)   # one-hot: t*t == t

    def _accumulate(n_full, tail_lanes):
        zeros = jnp.zeros((num_classes, acc_lanes), jnp.float32)
        acc = (zeros, zeros, zeros)
        if n_full > 0:
            def body(k, a):
                start = pl.multiple_of(k * acc_lanes, acc_lanes)
                return _chunk(start, None, a)
            acc = lax.fori_loop(0, n_full, body, acc, unroll=min(8, n_full))
        if tail_lanes:
            lane_ids = lax.broadcasted_iota(jnp.int32, (1, acc_lanes), 1)
            acc = _chunk(n_full * acc_lanes, lane_ids < tail_lanes, acc)
        acc_i, acc_z, acc_y = acc
        out_ref[0] += acc_i
        out_ref[1] += acc_z
        out_ref[2] += acc_y

    if needs_mask:
        # Only the last logical tile pays the ragged-tail mask.
        @pl.when(tile < nt - 1)
        def _full_tiles():
            _accumulate(num_chunks, 0)

        @pl.when(tile == nt - 1)
        def _last_tile():
            _accumulate(full_tail_chunks, tail_rem)
    elif needs_guard:
        pl.when(tile < nt)(lambda: _accumulate(num_chunks, 0))
    else:
        _accumulate(num_chunks, 0)


def _tensorcores_per_device():
    """2 on chips exposing 2 TensorCores per JAX device (v4/v5p/v7x), else 1."""
    try:
        dev = jax.devices()[0]
        if dev.platform != "tpu":
            return 1
        kind = str(getattr(dev, "device_kind", "")).lower()
        if any(tag in kind for tag in ("v4", "v5p", "v7")):
            return 2
    except Exception:
        pass
    return 1


def dice_loss(inputs, target, n_classes, weight=None, softmax=False,
              tile_n=None):
    """Pallas DiceLoss forward.

    inputs: (B, C, H, W) predictions (NCHW, like PyTorch), any float dtype.
    target: (B, 1, H, W) or (B, H, W) class-id labels in [0, n_classes).
    Returns a scalar float32 loss.
    """
    inputs = jnp.asarray(inputs)
    B, C, H, W = inputs.shape
    assert C == n_classes, "predict & target shape do not match"
    HW = H * W

    # Free, contiguous reshapes; no dtype widening in HBM.
    score = inputs.reshape(B, C, HW)
    labels = jnp.asarray(target).reshape(B, 1, HW)
    labels_are_float = bool(jnp.issubdtype(labels.dtype, jnp.floating))
    if labels_are_float and labels.dtype != jnp.float32:
        labels = labels.astype(jnp.float32)      # f16/bf16 labels: compare in f32

    # ---- accumulator lane width: widest of {128,256,512} under vreg budget --
    acc_lanes = _LANE
    while acc_lanes < 512 and 3 * C * (2 * acc_lanes // _LANE) <= 32:
        acc_lanes *= 2

    # ---- tile selection (HBM-saturating, VMEM- and codegen-bounded) ---------
    if HW < _LANE:
        tile_n = HW                              # single sub-128 tile (== full dim)
        acc_lanes = HW
    else:
        if tile_n is None:
            budget = 12 * 1024 * 1024            # double-buffered input bytes
            bytes_per_lane = 2 * (C * score.dtype.itemsize
                                  + labels.dtype.itemsize)
            tile_n = min(8192, max(_LANE, budget // max(1, bytes_per_lane)))
        tile_n = max(_LANE, min(int(tile_n), HW))
        tile_n = (tile_n // _LANE) * _LANE
        acc_lanes = min(acc_lanes, tile_n)
        tile_n = (tile_n // acc_lanes) * acc_lanes

    num_chunks = tile_n // acc_lanes
    nt = pl.cdiv(HW, tile_n)                     # tiles along H*W
    rem = HW - (nt - 1) * tile_n                 # valid lanes in last tile
    needs_mask = rem != tile_n                   # ragged lane tail
    full_tail_chunks = rem // acc_lanes
    tail_rem = rem % acc_lanes

    parts = 2 if (nt >= 2 and _tensorcores_per_device() > 1) else 1
    nt_per_part = pl.cdiv(nt, parts)
    needs_guard = parts * nt_per_part > nt       # odd tile count on 2-TC split

    def _tile_idx(p_, j_):
        t = p_ * nt_per_part + j_
        if needs_guard:
            t = jnp.minimum(t, nt - 1)           # clamp OOB block index
        return t

    kernel = functools.partial(
        _dice_sums_kernel,
        apply_softmax=softmax, num_classes=C,
        labels_are_float=labels_are_float,
        nt=nt, nt_per_part=nt_per_part, acc_lanes=acc_lanes,
        num_chunks=num_chunks, full_tail_chunks=full_tail_chunks,
        tail_rem=tail_rem, needs_mask=needs_mask, needs_guard=needs_guard)

    partials = pl.pallas_call(
        kernel,
        out_shape=jax.ShapeDtypeStruct((parts, 3, C, acc_lanes), jnp.float32),
        grid_spec=pltpu.PrefetchScalarGridSpec(
            num_scalar_prefetch=0,
            grid=(parts, B, nt_per_part),
            in_specs=[
                pl.BlockSpec((None, C, tile_n),
                             lambda p, b, j: (b, 0, _tile_idx(p, j))),
                pl.BlockSpec((None, 1, tile_n),
                             lambda p, b, j: (b, 0, _tile_idx(p, j))),
            ],
            out_specs=pl.BlockSpec((None, 3, C, acc_lanes),
                                   lambda p, b, j: (p, 0, 0, 0)),
        ),
        compiler_params=pltpu.CompilerParams(
            # TODO(synk): on v7x, verify via xprof that the leading axis really
            # shards across both TensorCores; if not, switch to
            # pltpu.CORE_PARALLEL / pl.core_map.
            dimension_semantics=("parallel", "arbitrary", "arbitrary"),
            vmem_limit_bytes=32 * 1024 * 1024,
        ),
    )(score, labels)

    # Tiny final reduction / scalar combination in plain JAX.
    sums = jnp.sum(partials, axis=(0, 3))        # (3, C)
    intersect, z_sum, y_sum = sums[0], sums[1], sums[2]
    smooth = 1e-05
    dice = 1.0 - (2.0 * intersect + smooth) / (z_sum + y_sum + smooth)

    if weight is None:
        w = jnp.ones((n_classes,), jnp.float32)
    else:
        w = jnp.asarray(weight, jnp.float32)
    # TODO(synk): the PyTorch module also builds a `class_wise_dice` python
    # list via .item() (host sync); it is not returned, so it is omitted here.
    return jnp.sum(dice * w) / n_classes


def _dice_loss_ref(inputs, target, n_classes, weight=None, softmax=False):
    """Pure-JAX reference mirroring the PyTorch module."""
    inputs = jnp.asarray(inputs).astype(jnp.float32)
    if softmax:
        inputs = jax.nn.softmax(inputs, axis=1)
    tgt = jnp.asarray(target).astype(jnp.float32).reshape(
        inputs.shape[0], 1, *inputs.shape[2:])
    onehot = jnp.concatenate(
        [(tgt == float(i)).astype(jnp.float32) for i in range(n_classes)],
        axis=1)
    if weight is None:
        weight = [1.0] * n_classes
    smooth = 1e-05
    loss = 0.0
    for i in range(n_classes):
        s = inputs[:, i]
        t = onehot[:, i]
        intersect = jnp.sum(s * t)
        y_sum = jnp.sum(t * t)
        z_sum = jnp.sum(s * s)
        dice = 1.0 - (2.0 * intersect + smooth) / (z_sum + y_sum + smooth)
        loss = loss + dice * weight[i]
    return loss / n_classes


if __name__ == "__main__":
    key = jax.random.PRNGKey(0)
    k1, k2, k3, k4, k5, k6, k7, k8 = jax.random.split(key, 8)

    # Case 1 & 2: B=2, C=4, 16x16 (H*W divisible by the tile width).
    B, C, H, W = 2, 4, 16, 16
    logits = jax.random.normal(k1, (B, C, H, W), jnp.float32)
    probs = jax.nn.softmax(logits, axis=1)
    target = jax.random.randint(k2, (B, 1, H, W), 0, C).astype(jnp.float32)

    out = jax.block_until_ready(dice_loss(probs, target, n_classes=C))
    ref = _dice_loss_ref(probs, target, n_classes=C)
    assert jnp.allclose(out, ref, rtol=1e-5, atol=1e-6), (out, ref)

    out_sm = jax.block_until_ready(
        dice_loss(logits, target, n_classes=C, softmax=True))
    ref_sm = _dice_loss_ref(logits, target, n_classes=C, softmax=True)
    assert jnp.allclose(out_sm, ref_sm, rtol=1e-5, atol=1e-6), (out_sm, ref_sm)

    # Case 3: ragged H*W (18*18 = 324, not a multiple of 128), int32 labels,
    # per-class weights, in-kernel softmax -> exercises last-tile-only masking.
    B3, C3, H3, W3 = 2, 3, 18, 18
    logits3 = jax.random.normal(k3, (B3, C3, H3, W3), jnp.float32)
    target3 = jax.random.randint(k4, (B3, 1, H3, W3), 0, C3)   # int32 labels
    w3 = [0.5, 1.0, 2.0]
    out3 = jax.block_until_ready(
        dice_loss(logits3, target3, n_classes=C3, weight=w3, softmax=True))
    ref3 = _dice_loss_ref(logits3, target3, n_classes=C3, weight=w3,
                          softmax=True)
    assert jnp.allclose(out3, ref3, rtol=1e-5, atol=1e-6), (out3, ref3)

    # Case 4: explicit small tile -> odd tile count, exercises the clamped
    # index map + in-kernel tile guard of the (gated) 2-way megacore split.
    B4, C4, H4, W4 = 1, 4, 16, 24      # HW = 384 -> 3 tiles of 128
    probs4 = jax.nn.softmax(
        jax.random.normal(k5, (B4, C4, H4, W4), jnp.float32), axis=1)
    target4 = jax.random.randint(k6, (B4, 1, H4, W4), 0, C4).astype(jnp.float32)
    out4 = jax.block_until_ready(
        dice_loss(probs4, target4, n_classes=C4, tile_n=128))
    ref4 = _dice_loss_ref(probs4, target4, n_classes=C4)
    assert jnp.allclose(out4, ref4, rtol=1e-5, atol=1e-6), (out4, ref4)

    # Case 5: native bf16 scores + int8 labels streamed from HBM (no wrapper
    # up-cast passes), softmax in-kernel.
    B5, C5, H5, W5 = 2, 4, 16, 16
    logits5 = jax.random.normal(k7, (B5, C5, H5, W5), jnp.float32).astype(
        jnp.bfloat16)
    target5 = jax.random.randint(k8, (B5, 1, H5, W5), 0, C5).astype(jnp.int8)
    out5 = jax.block_until_ready(
        dice_loss(logits5, target5, n_classes=C5, softmax=True))
    ref5 = _dice_loss_ref(logits5, target5, n_classes=C5, softmax=True)
    assert jnp.allclose(out5, ref5, rtol=1e-4, atol=1e-5), (out5, ref5)

    print("KERNEL_OK")
</pallas_src>

<mosaic_0001>
module attributes {stable_mosaic.version = 11 : i64} {
  func.func @_dice_sums_kernel(%arg0: i32, %arg1: i32, %arg2: i32, %arg3: memref<1x4x256xf32, #tpu.memory_space<vmem>>, %arg4: memref<1x1x256xf32, #tpu.memory_space<vmem>>, %arg5: memref<1x3x4x256xf32, #tpu.memory_space<vmem>>) attributes {dimension_semantics = [#tpu.dimension_semantics<parallel>, #tpu.dimension_semantics<arbitrary>, #tpu.dimension_semantics<arbitrary>], iteration_bounds = array<i64: 1, 2, 1>, scalar_prefetch = 0 : i64, scratch_operands = 0 : i64, tpu.core_type = #tpu.core_type<tc>, window_params = [{transform_indices = @transform_0, window_bounds = array<i64: 1, 4, 256>}, {transform_indices = @transform_1, window_bounds = array<i64: 1, 1, 256>}, {transform_indices = @transform_2, window_bounds = array<i64: 1, 3, 4, 256>}]} {
    %c0_i32 = arith.constant 0 : i32
    %0 = arith.cmpi eq, %arg1, %c0_i32 : i32
    %c0_i32_0 = arith.constant 0 : i32
    %1 = arith.cmpi eq, %arg2, %c0_i32_0 : i32
    %2 = arith.andi %0, %1 : i1
    %3 = arith.extui %2 : i1 to i32
    %c0_i32_1 = arith.constant 0 : i32
    %4 = arith.cmpi ne, %3, %c0_i32_1 : i32
    scf.if %4 {
      %cst_28 = arith.constant 0.000000e+00 : f32
      %43 = vector.broadcast %cst_28 : f32 to vector<3x4x256xf32>
      %c0_29 = arith.constant 0 : index
      %c0_30 = arith.constant 0 : index
      %c0_31 = arith.constant 0 : index
      %c0_32 = arith.constant 0 : index
      %44 = vector.load %arg5[%c0_29, %c0_30, %c0_31, %c0_32] : memref<1x3x4x256xf32, #tpu.memory_space<vmem>>, vector<1x3x4x256xf32>
      %45 = vector.shape_cast %44 : vector<1x3x4x256xf32> to vector<3x4x256xf32>
      %46 = vector.shape_cast %43 : vector<3x4x256xf32> to vector<1x3x4x256xf32>
      tpu.vector_store %arg5[%c0_29, %c0_30, %c0_31, %c0_32], %46 {strides = array<i32>} : memref<1x3x4x256xf32, #tpu.memory_space<vmem>>, vector<1x3x4x256xf32>,
    } else {
    }
    %5 = tpu.iota {dimensions = array<i32: 0>} : vector<4x256xi32>
    %6 = arith.sitofp %5 : vector<4x256xi32> to vector<4x256xf32>
    %cst = arith.constant 0.000000e+00 : f32
    %7 = vector.broadcast %cst : f32 to vector<4x256xf32>
    %c0_i32_2 = arith.constant 0 : i32
    %c256_i32 = arith.constant 256 : i32
    %8 = arith.muli %c0_i32_2, %c256_i32 : i32
    %9 = tpu.assume_multiple %8, 256 : i32
    %c0 = arith.constant 0 : index
    %c0_3 = arith.constant 0 : index
    %10 = arith.index_cast %9 : i32 to index
    %11 = vector.load %arg3[%c0, %c0_3, %10] : memref<1x4x256xf32, #tpu.memory_space<vmem>>, vector<1x4x256xf32>
    %12 = vector.shape_cast %11 : vector<1x4x256xf32> to vector<4x256xf32>
    %c0_4 = arith.constant 0 : index
    %c0_5 = arith.constant 0 : index
    %13 = arith.index_cast %9 : i32 to index
    %14 = vector.load %arg4[%c0_4, %c0_5, %13] : memref<1x1x256xf32, #tpu.memory_space<vmem>>, vector<1x1x256xf32>
    %15 = vector.shape_cast %14 : vector<1x1x256xf32> to vector<1x256xf32>
    %16 = vector.broadcast %15 : vector<1x256xf32> to vector<4x256xf32>
    %17 = arith.cmpf oeq, %16, %6 : vector<4x256xf32>
    %18 = arith.extui %17 : vector<4x256xi1> to vector<4x256xi32>
    %19 = arith.sitofp %18 : vector<4x256xi32> to vector<4x256xf32>
    %20 = arith.mulf %12, %19 : vector<4x256xf32>
    %21 = arith.addf %7, %20 : vector<4x256xf32>
    %22 = arith.mulf %12, %12 : vector<4x256xf32>
    %23 = arith.addf %7, %22 : vector<4x256xf32>
    %24 = arith.addf %7, %19 : vector<4x256xf32>
    %c1_i32 = arith.constant 1 : i32
    %c0_6 = arith.constant 0 : index
    %c0_7 = arith.constant 0 : index
    %c0_8 = arith.constant 0 : index
    %c0_9 = arith.constant 0 : index
    %25 = vector.load %arg5[%c0_6, %c0_7, %c0_8, %c0_9] : memref<1x3x4x256xf32, #tpu.memory_space<vmem>>, vector<1x1x4x256xf32>
    %26 = vector.shape_cast %25 : vector<1x1x4x256xf32> to vector<4x256xf32>
    %27 = arith.addf %26, %21 : vector<4x256xf32>
    %c0_10 = arith.constant 0 : index
    %c0_11 = arith.constant 0 : index
    %c0_12 = arith.constant 0 : index
    %c0_13 = arith.constant 0 : index
    %28 = vector.load %arg5[%c0_10, %c0_11, %c0_12, %c0_13] : memref<1x3x4x256xf32, #tpu.memory_space<vmem>>, vector<1x1x4x256xf32>
    %29 = vector.shape_cast %28 : vector<1x1x4x256xf32> to vector<4x256xf32>
    %30 = vector.shape_cast %27 : vector<4x256xf32> to vector<1x1x4x256xf32>
    tpu.vector_store %arg5[%c0_10, %c0_11, %c0_12, %c0_13], %30 {strides = array<i32>} : memref<1x3x4x256xf32, #tpu.memory_space<vmem>>, vector<1x1x4x256xf32>,
    %c0_14 = arith.constant 0 : index
    %c1 = arith.constant 1 : index
    %c0_15 = arith.constant 0 : index
    %c0_16 = arith.constant 0 : index
    %31 = vector.load %arg5[%c0_14, %c1, %c0_15, %c0_16] : memref<1x3x4x256xf32, #tpu.memory_space<vmem>>, vector<1x1x4x256xf32>
    %32 = vector.shape_cast %31 : vector<1x1x4x256xf32> to vector<4x256xf32>
    %33 = arith.addf %32, %23 : vector<4x256xf32>
    %c0_17 = arith.constant 0 : index
    %c1_18 = arith.constant 1 : index
    %c0_19 = arith.constant 0 : index
    %c0_20 = arith.constant 0 : index
    %34 = vector.load %arg5[%c0_17, %c1_18, %c0_19, %c0_20] : memref<1x3x4x256xf32, #tpu.memory_space<vmem>>, vector<1x1x4x256xf32>
    %35 = vector.shape_cast %34 : vector<1x1x4x256xf32> to vector<4x256xf32>
    %36 = vector.shape_cast %33 : vector<4x256xf32> to vector<1x1x4x256xf32>
    tpu.vector_store %arg5[%c0_17, %c1_18, %c0_19, %c0_20], %36 {strides = array<i32>} : memref<1x3x4x256xf32, #tpu.memory_space<vmem>>, vector<1x1x4x256xf32>,
    %c0_21 = arith.constant 0 : index
    %c2 = arith.constant 2 : index
    %c0_22 = arith.constant 0 : index
    %c0_23 = arith.constant 0 : index
    %37 = vector.load %arg5[%c0_21, %c2, %c0_22, %c0_23] : memref<1x3x4x256xf32, #tpu.memory_space<vmem>>, vector<1x1x4x256xf32>
    %38 = vector.shape_cast %37 : vector<1x1x4x256xf32> to vector<4x256xf32>
    %39 = arith.addf %38, %24 : vector<4x256xf32>
    %c0_24 = arith.constant 0 : index
    %c2_25 = arith.constant 2 : index
    %c0_26 = arith.constant 0 : index
    %c0_27 = arith.constant 0 : index
    %40 = vector.load %arg5[%c0_24, %c2_25, %c0_26, %c0_27] : memref<1x3x4x256xf32, #tpu.memory_space<vmem>>, vector<1x1x4x256xf32>
    %41 = vector.shape_cast %40 : vector<1x1x4x256xf32> to vector<4x256xf32>
    %42 = vector.shape_cast %39 : vector<4x256xf32> to vector<1x1x4x256xf32>
    tpu.vector_store %arg5[%c0_24, %c2_25, %c0_26, %c0_27], %42 {strides = array<i32>} : memref<1x3x4x256xf32, #tpu.memory_space<vmem>>, vector<1x1x4x256xf32>,
    return
  }
  func.func @transform_0(%arg0: i32, %arg1: i32, %arg2: i32) -> (i32, i32, i32) {
    %c1_i32 = arith.constant 1 : i32
    %0 = arith.muli %arg0, %c1_i32 : i32
    %1 = arith.addi %0, %arg2 : i32
    %c0_i32 = arith.constant 0 : i32
    %c0_i32_0 = arith.constant 0 : i32
    return %arg1, %c0_i32, %1 : i32, i32, i32
  }
  func.func @transform_1(%arg0: i32, %arg1: i32, %arg2: i32) -> (i32, i32, i32) {
    %c1_i32 = arith.constant 1 : i32
    %0 = arith.muli %arg0, %c1_i32 : i32
    %1 = arith.addi %0, %arg2 : i32
    %c0_i32 = arith.constant 0 : i32
    %c0_i32_0 = arith.constant 0 : i32
    return %arg1, %c0_i32, %1 : i32, i32, i32
  }
  func.func @transform_2(%arg0: i32, %arg1: i32, %arg2: i32) -> (i32, i32, i32, i32) {
    %c0_i32 = arith.constant 0 : i32
    %c0_i32_0 = arith.constant 0 : i32
    %c0_i32_1 = arith.constant 0 : i32
    %c0_i32_2 = arith.constant 0 : i32
    return %arg0, %c0_i32, %c0_i32_0, %c0_i32_1 : i32, i32, i32, i32
  }
}

</mosaic_0001>

<llo_original>
// kernel: tpu_custom_call.1
$region0: #{tpu_custom_call.1}
  #allocation0 [shape = 'u32[]', space=smem, size = 0x4, offset = 0x4, fixed_abs, tag = 'smem constant byte address 0x4 - core index']
  #allocation1 [shape = 'u32[72,128]{1,0:T(1,128)}', space=vmem, size = 0x9000, scoped, tag = 'internal scratch']
  %s0 = inlined_call_operand.hbm [shape: f32[2,4,256], index: 0, kind: input, shape index: {}]
  %s1 = inlined_call_operand.hbm [shape: f32[2,1,256], index: 1, kind: input, shape index: {}]
  %s2 = inlined_call_operand.hbm [shape: f32[1,3,4,256], index: 2, kind: output, shape index: {}]
  %s3 = sld [smem:[#allocation0]]
  $region53: #{tpu_custom_call.1} parent=0
    _
  %s5 = ssub.s32 1, %s3
  %s6 = scalar_select 0, %s5, %s3
  $region1: #{tpu_custom_call.1} parent=0
    #allocation2 [shape = 'u8[8192]{0}', space=vmem, size = 0x2000, scoped, tag = 'input window, operand 0']
    #allocation3 [shape = 's32[2]{0}', space=sflag, size = 0x8, scoped, tag = 'scoped memory for tpu_custom_call.1']
    #allocation4 [shape = 's32[2]{0}', space=sflag, size = 0x8, scoped, tag = 'scoped memory for tpu_custom_call.1']
    #allocation5 [shape = 'u8[2048]{0}', space=vmem, size = 0x800, scoped, tag = 'input window, operand 1']
    #allocation6 [shape = 's32[2]{0}', space=sflag, size = 0x8, scoped, tag = 'scoped memory for tpu_custom_call.1']
    #allocation7 [shape = 'u8[12288]{0}', space=vmem, size = 0x3000, scoped, tag = 'output window, operand 0, single buffered']
    %7 = vsyncpa [#allocation3], 0
    %s8 = scalar_lea.sflag [#allocation3], 1
    %9 = vsyncpa %s8, 0
    %10 = vsyncpa [#allocation6], 0
    %s11 = scalar_lea.sflag [#allocation6], 1
    %12 = vsyncpa %s11, 0
    %13 = vsyncpa [#allocation4], 0
    loop: start=0, step=1, limit=4
    $region2: #{tpu_custom_call.1} parent=1 // loop_pre_header
      _
    $region3: #{tpu_custom_call.1} parent=1 // loop_header
      %s15 = sphi 0, %s19
      %p16 = scmp.ge.s32.totalorder %s15, 4
      %s22 = sphi 0, %s41
      %s23 = sphi 0, %s37
      %s24 = sphi 0, %s33
      %s25 = sphi 0, %s22
      %s26 = sphi 0, %s23
      %s27 = sphi 0, %s24
      %s28 = sphi 0, %s25
      %s29 = sphi 0, %s26
      %s30 = sphi 0, %s27
      %s48 = sphi 0, %s50
      %s51 = sphi 0, %s48
      %s52 = sphi 0, %s51
      %s68 = sphi 0, %s52
      %s78 = sphi 0, %s80
      %s81 = sphi 0, %s78
      %s82 = sphi 0, %s81
      %s98 = sphi 0, %s82
      %s104 = sphi 0, %s106
      %s107 = sphi 0, %s104
      %s108 = sphi 0, %s107
      %s124 = sphi 0, %s108
    $region4: #{tpu_custom_call.1} parent=1 // loop_header_branch
      %18 = sbr.rel (%p16) target = $region8
    $region5: #{tpu_custom_call.1} parent=1 // loop_body
      %s20 = ssub.s32 %s15, 1
      %s21 = ssub.s32 %s15, 2
      %s31 = sadd.s32 1, %s24
      %p32 = scmp.ge.s32.totalorder %s31, 1
      %s33 = scalar_select %p32, 0, %s31
      %s34 = sadd.s32 1, %s23
      %s35 = scalar_select %p32, %s34, %s23
      %p36 = scmp.ge.s32.totalorder %s35, 2
      %s37 = scalar_select %p36, 0, %s35
      %s38 = sadd.s32 1, %s22
      %s39 = scalar_select %p36, %s38, %s22
      %p40 = scmp.ge.s32.totalorder %s39, 1
      %s41 = scalar_select %p40, 0, %s39
      %s42 = sadd.s32 %s22, %s24
      %s43 = sadd.s32 %s41, %s33
      %s44 = ssub.s32 %s23, %s37
      %s45 = ssub.s32 %s42, %s43
      %s46 = sor.u32 %s44, %s45
      %p47 = scmp.eq.s32.totalorder %s46, 0
      %s49 = sadd.s32 %s48, 1
      %s50 = scalar_select %p47, %s48, %s49
      %p53 = pneg %p47
      %p54 = scmp.eq.s32.totalorder %s15, 1
      %p55 = por %p53, %p54
      %p56 = scmp.ne.s32.totalorder %s48, %s51
      %p57 = scmp.eq.s32.totalorder %s15, 0
      %p58 = por %p56, %p57
      %p59 = scmp.ne.s32.totalorder %s48, %s51
      %p60 = scmp.eq.s32.totalorder %s20, 1
      %p61 = por %p59, %p60
      %p62 = scmp.ne.s32.totalorder %s51, %s52
      %p63 = scmp.eq.s32.totalorder %s20, 0
      %p64 = por %p62, %p63
      %p65 = scmp.ne.s32.totalorder %s51, %s52
      %p66 = scmp.eq.s32.totalorder %s21, 1
      %p67 = por %p65, %p66
      %p69 = scmp.ne.s32.totalorder %s52, %s68
      %p70 = scmp.eq.s32.totalorder %s21, 0
      %p71 = por %p69, %p70
      %s72 = sadd.s32 %s22, %s24
      %s73 = sadd.s32 %s41, %s33
      %s74 = ssub.s32 %s23, %s37
      %s75 = ssub.s32 %s72, %s73
      %s76 = sor.u32 %s74, %s75
      %p77 = scmp.eq.s32.totalorder %s76, 0
      %s79 = sadd.s32 %s78, 1
      %s80 = scalar_select %p77, %s78, %s79
      %p83 = pneg %p77
      %p84 = scmp.eq.s32.totalorder %s15, 1
      %p85 = por %p83, %p84
      %p86 = scmp.ne.s32.totalorder %s78, %s81
      %p87 = scmp.eq.s32.totalorder %s15, 0
      %p88 = por %p86, %p87
      %p89 = scmp.ne.s32.totalorder %s78, %s81
      %p90 = scmp.eq.s32.totalorder %s20, 1
      %p91 = por %p89, %p90
      %p92 = scmp.ne.s32.totalorder %s81, %s82
      %p93 = scmp.eq.s32.totalorder %s20, 0
      %p94 = por %p92, %p93
      %p95 = scmp.ne.s32.totalorder %s81, %s82
      %p96 = scmp.eq.s32.totalorder %s21, 1
      %p97 = por %p95, %p96
      %p99 = scmp.ne.s32.totalorder %s82, %s98
      %p100 = scmp.eq.s32.totalorder %s21, 0
      %p101 = por %p99, %p100
      %s102 = ssub.s32 %s22, %s41
      %p103 = scmp.eq.s32.totalorder %s102, 0
      %s105 = sadd.s32 %s104, 1
      %s106 = scalar_select %p103, %s104, %s105
      %p109 = pneg %p103
      %p110 = scmp.eq.s32.totalorder %s15, 1
      %p111 = por %p109, %p110
      %p112 = scmp.ne.s32.totalorder %s104, %s107
      %p113 = scmp.eq.s32.totalorder %s15, 0
      %p114 = por %p112, %p113
      %p115 = scmp.ne.s32.totalorder %s104, %s107
      %p116 = scmp.eq.s32.totalorder %s20, 1
      %p117 = por %p115, %p116
      %p118 = scmp.ne.s32.totalorder %s107, %s108
      %p119 = scmp.eq.s32.totalorder %s20, 0
      %p120 = por %p118, %p119
      %p121 = scmp.ne.s32.totalorder %s107, %s108
      %p122 = scmp.eq.s32.totalorder %s21, 1
      %p123 = por %p121, %p122
      %p125 = scmp.ne.s32.totalorder %s108, %s124
      %p126 = scmp.eq.s32.totalorder %s21, 0
      %p127 = por %p125, %p126
      %p128 = scmp.le.s32.totalorder 1, %s15
      %p129 = scmp.lt.s32.totalorder %s15, 3
      %p130 = pnand %p128, %p129
      %p131 = pneg %p130
      // Predicated region
      $region9: #{tpu_custom_call.1} parent=5 // pred_check
        _
      $region10: #{tpu_custom_call.1} parent=5 // pred_check_branch
        %133 = sbr.rel (%p130) target = $region12
      $region11: #{tpu_custom_call.1} parent=5 // pred_region
        %s134 = ssub.s32 %s15, 1
      $region12: #{tpu_custom_call.1} parent=5 // pred_fallthru
        _
      %p135 = scmp.lt.s32.totalorder %s15, 2
      // Predicated region
      $region13: #{tpu_custom_call.1} parent=5 // pred_check
        %p136 = pneg %p135
      $region14: #{tpu_custom_call.1} parent=5 // pred_check_branch
        %138 = sbr.rel (%p136) target = $region16
      $region15: #{tpu_custom_call.1} parent=5 // pred_region
        // Predicated region
        $region17: #{tpu_custom_call.1} parent=15 // pred_check
          %p139 = pneg %p58
        $region18: #{tpu_custom_call.1} parent=15 // pred_check_branch
          %141 = sbr.rel (%p139) target = $region20
        $region19: #{tpu_custom_call.1} parent=15 // pred_region
          %s142 = sand.u32 %s48, 1
          %s143 = scalar_lea.sflag [#allocation3], %s142
          %s144 = sand.u32 %s48, 1
          %s145 = smul.addr %s144, 8
          %s146 = scalar_lea.vmem [#allocation2], %s145
          %s147 = sadd.s32 %s22, %s24
          %s148 = smul.u32 2, %s147
          %150 = vsyncadd %s143, 0
          %s151 = smul.addr %s23, 2
          %s152 = sadd.s32 %s148, %s151
          %s153 = smul.addr %s152, 4
          %s154 = scalar_lea.hbm %s0, %s153
          %s156 = sshll.u32 %s154, 4
          %s157 = int_to_ptr.hbm [resolvable:$true] %s156
          %s158 = sshll.u32 %s146, 4
          %s159 = int_to_ptr.vmem [resolvable:$true] %s158
          %161 = dma.hbm_to_vmem [thread:$0]  %s157, 128, %s159, %s143
        $region20: #{tpu_custom_call.1} parent=15 // pred_fallthru
          _
        // Predicated region
        $region21: #{tpu_custom_call.1} parent=15 // pred_check
          %p162 = pneg %p88
        $region22: #{tpu_custom_call.1} parent=15 // pred_check_branch
          %164 = sbr.rel (%p162) target = $region24
        $region23: #{tpu_custom_call.1} parent=15 // pred_region
          %s165 = sand.u32 %s78, 1
          %s166 = scalar_lea.sflag [#allocation6], %s165
          %s167 = sand.u32 %s78, 1
          %s168 = smul.addr %s167, 2
          %s169 = scalar_lea.vmem [#allocation5], %s168
          %s170 = sadd.s32 %s22, %s24
          %s171 = smul.u32 2, %s170
          %173 = vsyncadd %s166, 0
          %s174 = smul.addr %s23, 2
          %s175 = sadd.s32 %s171, %s174
          %s176 = scalar_lea.hbm %s1, %s175
          %s178 = sshll.u32 %s176, 4
          %s179 = int_to_ptr.hbm [resolvable:$true] %s178
          %s180 = sshll.u32 %s169, 4
          %s181 = int_to_ptr.vmem [resolvable:$true] %s180
          %183 = dma.hbm_to_vmem [thread:$0]  %s179, 32, %s181, %s166
        $region24: #{tpu_custom_call.1} parent=15 // pred_fallthru
          _
      $region16: #{tpu_custom_call.1} parent=5 // pred_fallthru
        _
      %p184 = scmp.le.s32.totalorder 1, %s15
      %p185 = scmp.lt.s32.totalorder %s15, 3
      %p186 = pnand %p184, %p185
      %p187 = pneg %p186
      // Predicated region
      $region25: #{tpu_custom_call.1} parent=5 // pred_check
        _
      $region26: #{tpu_custom_call.1} parent=5 // pred_check_branch
        %189 = sbr.rel (%p186) target = $region28
      $region27: #{tpu_custom_call.1} parent=5 // pred_region
        %s190 = ssub.s32 %s15, 1
        %s191 = sand.u32 %s51, 1
        %s192 = scalar_lea.sflag [#allocation3], %s191
        %s193 = sand.u32 %s51, 1
        %s194 = smul.addr %s193, 8
        %s195 = scalar_lea.vmem [#allocation2], %s194
        // Predicated region
        $region29: #{tpu_custom_call.1} parent=27 // pred_check
          %p196 = pneg %p64
        $region30: #{tpu_custom_call.1} parent=27 // pred_check_branch
          %198 = sbr.rel (%p196) target = $region32
        $region31: #{tpu_custom_call.1} parent=27 // pred_region
          %200 = dma.done %s192, 128
        $region32: #{tpu_custom_call.1} parent=27 // pred_fallthru
          _
        %s201 = sand.u32 %s81, 1
        %s202 = scalar_lea.sflag [#allocation6], %s201
        %s203 = sand.u32 %s81, 1
        %s204 = smul.addr %s203, 2
        %s205 = scalar_lea.vmem [#allocation5], %s204
        // Predicated region
        $region33: #{tpu_custom_call.1} parent=27 // pred_check
          %p206 = pneg %p94
        $region34: #{tpu_custom_call.1} parent=27 // pred_check_branch
          %208 = sbr.rel (%p206) target = $region36
        $region35: #{tpu_custom_call.1} parent=27 // pred_region
          %210 = dma.done %s202, 32
        $region36: #{tpu_custom_call.1} parent=27 // pred_fallthru
          _
        %s211 = sand.u32 %s51, 1
        %s212 = scalar_lea.sflag [#allocation3], %s211
        %s213 = sand.u32 %s51, 1
        %s214 = smul.addr %s213, 8
        %s215 = scalar_lea.vmem [#allocation2], %s214
        %p216 = pneg %p64
        %p217 = pneg %p61
        %s218 = sand.u32 %s81, 1
        %s219 = scalar_lea.sflag [#allocation6], %s218
        %s220 = sand.u32 %s81, 1
        %s221 = smul.addr %s220, 2
        %s222 = scalar_lea.vmem [#allocation5], %s221
        %p223 = pneg %p94
        %p224 = pneg %p91
        %p225 = pneg %p120
        %p226 = pneg %p117
        %s227 = sadd.s32 %s25, %s27
        %s228 = smul.u32 2, %s227
        %s229 = sadd.s32 %s25, %s27
        %s230 = smul.u32 2, %s229
        %p231 = scmp.eq.s32.totalorder %s26, 0
        %p232 = scmp.eq.s32.totalorder %s27, 0
        %p233 = pnand %p231, %p232
        %p234 = pneg %p233
        // Predicated region
        $region37: #{tpu_custom_call.1} parent=27 // pred_check
          _
        $region38: #{tpu_custom_call.1} parent=27 // pred_check_branch
          %236 = sbr.rel (%p233) target = $region40
        $region39: #{tpu_custom_call.1} parent=27 // pred_region
          %237 = vst [vmem:[#allocation7] sm:$0xff] 0.0
          %238 = vst [vmem:[#allocation7 + $0x8] sm:$0xff] 0.0
          %239 = vst [vmem:[#allocation7 + $0x10] sm:$0xff] 0.0
        $region40: #{tpu_custom_call.1} parent=27 // pred_fallthru
          _
        %v240 = vlaneseq
        %v241 = vshrl.u32 %v240, 7
        %v242 = vcvt.s32.f32 %v241
        %v243 = vld [vmem:[%s195] sm:$0xff]
        %v244 = vld [vmem:[%s205] sm:$0x3]
        %v246 = vperm.slane %v244, 0
        %v247 = vperm.slane %v244, 1
        %vm250 = vcmp.eq.f32.partialorder %v246, %v242
        %vm251 = vcmp.eq.f32.partialorder %v247, %v242
        %v252 = vsel %vm250, 1, 0
        %v253 = vsel %vm251, 1, 0
        %v254 = vcvt.s32.f32 %v252
        %v255 = vcvt.s32.f32 %v253
        %v258 = vrot.slane %v255, 4
        %vm259 = vcmask 1043456
        %v260 = vsel %vm259, %v254, %v258
        %v262 = vmul.f32 %v243, %v260
        %v263 = vadd.f32 %v262, 0.0
        %v264 = vmul.f32 %v243, %v243
        %v265 = vadd.f32 %v264, 0.0
        %v266 = vadd.f32 %v254, 0.0
        %v267 = vadd.f32 %v255, 0.0
        %v268 = vld [vmem:[#allocation7] sm:$0xff]
        %v269 = vadd.f32 %v268, %v263
        %270 = vst [vmem:[#allocation7] sm:$0xff] %v269
        %s271 = scalar_lea.vmem [#allocation7], 8
        %v272 = vld [vmem:[%s271] sm:$0xff]
        %v273 = vadd.f32 %v272, %v265
        %274 = vst [vmem:[%s271] sm:$0xff] %v273
        %s275 = scalar_lea.vmem [#allocation7], 16
        %v276 = vld [vmem:[%s275] sm:$0xff]
        %v279 = vrot.slane %v267, 4
        %v280 = vsel %vm259, %v266, %v279
        %v282 = vadd.f32 %v276, %v280
        %283 = vst [vmem:[%s275] sm:$0xff] %v282
        // Predicated region
        $region41: #{tpu_custom_call.1} parent=27 // pred_check
          %p284 = pneg %p117
        $region42: #{tpu_custom_call.1} parent=27 // pred_check_branch
          %286 = sbr.rel (%p284) target = $region44
        $region43: #{tpu_custom_call.1} parent=27 // pred_region
          %288 = vsyncadd [#allocation4], 0
          %s289 = smul.addr %s25, 6
          %s290 = smul.addr %s289, 4
          %s291 = scalar_lea.hbm %s2, %s290
          %s292 = sshll.u32 [#allocation7], 4
          %s293 = int_to_ptr.vmem [resolvable:$true] %s292
          %s294 = sshll.u32 %s291, 4
          %s295 = int_to_ptr.hbm [resolvable:$true] %s294
          %300 = dma.vmem_to_hbm [thread:$0]  %s293, 384, %s295, [#allocation4], 128, 128, 8
        $region44: #{tpu_custom_call.1} parent=27 // pred_fallthru
          _
        // Predicated region
        $region45: #{tpu_custom_call.1} parent=27 // pred_check
          %p301 = pneg %p117
        $region46: #{tpu_custom_call.1} parent=27 // pred_check_branch
          %303 = sbr.rel (%p301) target = $region48
        $region47: #{tpu_custom_call.1} parent=27 // pred_region
          %305 = dma.done [#allocation4], 384
        $region48: #{tpu_custom_call.1} parent=27 // pred_fallthru
          _
      $region28: #{tpu_custom_call.1} parent=5 // pred_fallthru
        _
      %p306 = scmp.le.s32.totalorder 2, %s15
      // Predicated region
      $region49: #{tpu_custom_call.1} parent=5 // pred_check
        %p307 = pneg %p306
      $region50: #{tpu_custom_call.1} parent=5 // pred_check_branch
        %309 = sbr.rel (%p307) target = $region52
      $region51: #{tpu_custom_call.1} parent=5 // pred_region
        %s310 = ssub.s32 %s15, 2
      $region52: #{tpu_custom_call.1} parent=5 // pred_fallthru
        _
    $region6: #{tpu_custom_call.1} parent=1 // loop_footer
      %s19 = sadd.s32 1, %s15
    $region7: #{tpu_custom_call.1} parent=1 // loop_footer_branch
      %14 = sbr.rel target = $region3
    $region8: #{tpu_custom_call.1} parent=1 // loop_exit
      _
    %311 = vsyncpa [#allocation3], 1
    %s312 = scalar_lea.sflag [#allocation3], 1
    %313 = vsyncpa %s312, 1
    %314 = vsyncpa [#allocation6], 1
    %s315 = scalar_lea.sflag [#allocation6], 1
    %316 = vsyncpa %s315, 1
    %317 = vsyncpa [#allocation4], 1
    %s318 = scalar_lea.sflag [#allocation4], 1
    %319 = vsyncpa %s318, 1

</llo_original>
